<compile_context>
chip_gen: v6e
topology: v6e:2x2x1
jax: 0.10.0
libtpu: 0.0.40
codegen_flags: <defaults>
</compile_context>

<pallas_src>
import functools

import jax
import jax.numpy as jnp
from jax import lax
from jax.experimental import pallas as pl
from jax.experimental.pallas import tpu as pltpu

INPUT_DIM = 32          # stands in for X_train.shape[1]
H1, H2, H3, OUT = 128, 64, 32, 1


def _round_up(n, m):
    return ((n + m - 1) // m) * m


def _cdiv(a, b):
    return (a + b - 1) // b


def _mlp_kernel(x_ref,
                w1_ref, b1_ref,
                w2_ref, b2_ref,
                w3_ref, b3_ref,
                w4_ref, b4_ref,
                o_ref):
    """Fused forward pass for one batch tile.

    x arrives in its natural (bt, D) layout.  Layer 1 contracts the feature
    axis of both operands on the MXU, so activations come out features-major
    ((features, bt): batch on the 128-lane axis) with no HBM-side transpose of
    x.  Weights are PyTorch-style (out, in), pre-cast to the matmul dtype in
    the wrapper; biases are (out, 1) f32 columns; w4 is an (H3, 1) f32 column.
    """
    mm_dtype = w1_ref.dtype

    x = x_ref[...].astype(mm_dtype)                               # (bt, D)
    h1 = lax.dot_general(w1_ref[...], x,
                         dimension_numbers=(((1,), (1,)), ((), ())),
                         preferred_element_type=jnp.float32)      # (H1, bt)
    a = jnp.maximum(h1 + b1_ref[...], 0.0)                        # f32 ReLU

    def dense_relu(w_ref, b_ref, act):
        h = jnp.dot(w_ref[...], act.astype(mm_dtype),
                    preferred_element_type=jnp.float32) + b_ref[...]
        return jnp.maximum(h, 0.0)

    a = dense_relu(w2_ref, b2_ref, a)                             # (H2, bt)
    a = dense_relu(w3_ref, b3_ref, a)                             # (H3, bt)

    # Final 32 -> 1 layer: VPU multiply + XLU sublane reduce; never pushes a
    # 1-row tile through the MXU.
    logits = jnp.sum(a * w4_ref[...], axis=0, keepdims=True) + b4_ref[...]  # (1, bt)

    # Sigmoid entirely on the EUP: exp + approximate reciprocal (vrcp).
    o_ref[...] = pl.reciprocal(1.0 + jnp.exp(-logits),
                               approx=True).astype(o_ref.dtype)


def _choose_tile(batch, batch_tile):
    """128-aligned batch tile, rebalanced so tiles are even-sized, with >= 2
    grid steps when the batch allows (so the 'parallel' axis shards across the
    two v7x TensorCores)."""
    bp = _round_up(batch, 128)
    bt = min(_round_up(batch_tile, 128), bp)
    num_tiles = _cdiv(bp, bt)
    if num_tiles == 1 and bp >= 2 * 128:
        num_tiles = 2
    bt = _round_up(_cdiv(bp, num_tiles), 128)      # balance the tile sizes
    num_tiles = _cdiv(bp, bt)
    return bt, num_tiles


@functools.partial(jax.jit, static_argnames=("batch_tile", "use_bf16_matmul"))
def deep_mlp_forward(x, params, *, batch_tile=2048, use_bf16_matmul=True):
    """x: [B, INPUT_DIM] f32 -> [B, 1] f32 (sigmoid probabilities)."""
    (w1, b1), (w2, b2), (w3, b3), (w4, b4) = params
    B, D = x.shape
    assert D == INPUT_DIM

    bt, num_tiles = _choose_tile(B, batch_tile)
    rows = num_tiles * bt

    # One-time operand prep (all tiny; no HBM pass over x).
    mm_dtype = jnp.bfloat16 if use_bf16_matmul else jnp.float32
    w1m, w2m, w3m = (w.astype(mm_dtype) for w in (w1, w2, w3))
    b1c, b2c, b3c = b1.reshape(-1, 1), b2.reshape(-1, 1), b3.reshape(-1, 1)
    w4c = w4.reshape(OUT, H3).T.astype(jnp.float32)               # (H3, 1)
    b4c = b4.reshape(1, 1)

    full_map = lambda i: (0, 0)
    weight_operands = (w1m, b1c, w2m, b2c, w3m, b3c, w4c, b4c)
    weight_specs = [pl.BlockSpec(t.shape, full_map) for t in weight_operands]

    wbytes = ((w1.size + w2.size + w3.size) * (2 if use_bf16_matmul else 4)
              + (w4.size + b1.size + b2.size + b3.size + b4.size) * 4)
    cost = pl.CostEstimate(
        flops=2 * rows * (D * H1 + H1 * H2 + H2 * H3 + H3 * OUT),
        transcendentals=2 * rows,
        bytes_accessed=rows * D * 4 + rows * 4 + wbytes)

    out = pl.pallas_call(
        _mlp_kernel,
        out_shape=jax.ShapeDtypeStruct((1, rows), jnp.float32),
        grid_spec=pltpu.PrefetchScalarGridSpec(
            num_scalar_prefetch=0,
            grid=(num_tiles,),
            # x stays in its natural [B, D] layout; the ragged last block is
            # padded with unspecified data that stays confined to discarded
            # output columns (no cross-column reductions in this kernel).
            in_specs=[pl.BlockSpec((bt, D), lambda i: (i, 0))] + weight_specs,
            # Lane-dense output slab: unmasked (1, bt) stores, batch on lanes.
            out_specs=pl.BlockSpec((1, bt), lambda i: (0, i)),
        ),
        compiler_params=pltpu.CompilerParams(
            dimension_semantics=("parallel",),
            vmem_limit_bytes=(32 << 20) if bt >= 4096 else None),
        cost_estimate=cost,
    )(x, *weight_operands)

    # Back to the PyTorch-equivalent [B, 1] interface.
    return out.reshape(rows, 1)[:B]


def init_params(key):
    """PyTorch nn.Linear-style params: W is (out, in), b is (out,),
    init U(-1/sqrt(fan_in), 1/sqrt(fan_in))."""
    dims = [(INPUT_DIM, H1), (H1, H2), (H2, H3), (H3, OUT)]
    params = []
    for i, (fan_in, fan_out) in enumerate(dims):
        kw, kb = jax.random.split(jax.random.fold_in(key, i))
        bound = 1.0 / (float(fan_in) ** 0.5)
        w = jax.random.uniform(kw, (fan_out, fan_in), jnp.float32, -bound, bound)
        b = jax.random.uniform(kb, (fan_out,), jnp.float32, -bound, bound)
        params.append((w, b))
    return tuple(params)


def reference_forward(x, params):
    h = x
    for i, (w, b) in enumerate(params):
        h = h @ w.T + b
        if i < len(params) - 1:
            h = jnp.maximum(h, 0.0)
    return jax.nn.sigmoid(h)


if __name__ == "__main__":
    key = jax.random.PRNGKey(0)
    k_x, k_p = jax.random.split(key)
    params = init_params(k_p)

    # Small demo batch (row-vector inputs, as in the PyTorch module).
    B = 8
    x = jax.random.normal(k_x, (B, INPUT_DIM), dtype=jnp.float32)
    ref = reference_forward(x, params)

    # Default path: bf16 MXU inputs, f32 accumulation (relaxed tolerance for
    # bf16 input rounding + approx-reciprocal sigmoid).
    out = jax.block_until_ready(deep_mlp_forward(x, params))
    assert out.shape == (B, 1), out.shape
    assert jnp.allclose(out, ref, atol=2e-2, rtol=2e-2), (
        f"bf16 path max err {float(jnp.max(jnp.abs(out - ref)))}")

    # Exact-dtype path (f32 MXU inputs): tight tolerance vs the f32 reference.
    out_f32 = jax.block_until_ready(
        deep_mlp_forward(x, params, use_bf16_matmul=False))
    assert jnp.allclose(out_f32, ref, atol=2e-3, rtol=2e-3), (
        f"f32 path max err {float(jnp.max(jnp.abs(out_f32 - ref)))}")

    # Ragged batch: exercises the >=2-step "parallel" grid (both v7x
    # TensorCores) and Pallas's ragged last input block (no wrapper padding).
    B2 = 1153
    x2 = jax.random.normal(jax.random.fold_in(k_x, 1), (B2, INPUT_DIM),
                           dtype=jnp.float32)
    out2 = jax.block_until_ready(deep_mlp_forward(x2, params))
    ref2 = reference_forward(x2, params)
    assert out2.shape == (B2, 1), out2.shape
    assert jnp.allclose(out2, ref2, atol=2e-2, rtol=2e-2), (
        f"bf16 ragged max err {float(jnp.max(jnp.abs(out2 - ref2)))}")

    print("KERNEL_OK")
</pallas_src>

<mosaic_0001>
module attributes {stable_mosaic.version = 11 : i64} {
  func.func @_mlp_kernel(%arg0: i32, %arg1: memref<128x32xf32, #tpu.memory_space<vmem>>, %arg2: memref<128x32xbf16, #tpu.memory_space<vmem>>, %arg3: memref<128x1xf32, #tpu.memory_space<vmem>>, %arg4: memref<64x128xbf16, #tpu.memory_space<vmem>>, %arg5: memref<64x1xf32, #tpu.memory_space<vmem>>, %arg6: memref<32x64xbf16, #tpu.memory_space<vmem>>, %arg7: memref<32x1xf32, #tpu.memory_space<vmem>>, %arg8: memref<32x1xf32, #tpu.memory_space<vmem>>, %arg9: memref<1x1xf32, #tpu.memory_space<vmem>>, %arg10: memref<1x128xf32, #tpu.memory_space<vmem>>) attributes {dimension_semantics = [#tpu.dimension_semantics<parallel>], iteration_bounds = array<i64: 1>, scalar_prefetch = 0 : i64, scratch_operands = 0 : i64, tpu.core_type = #tpu.core_type<tc>, window_params = [{transform_indices = @transform_0, window_bounds = array<i64: 128, 32>}, {pipeline_mode = #tpu.pipeline_mode<synchronous>, transform_indices = @transform_1, window_bounds = array<i64: 128, 32>}, {pipeline_mode = #tpu.pipeline_mode<synchronous>, transform_indices = @transform_2, window_bounds = array<i64: 128, 1>}, {pipeline_mode = #tpu.pipeline_mode<synchronous>, transform_indices = @transform_3, window_bounds = array<i64: 64, 128>}, {pipeline_mode = #tpu.pipeline_mode<synchronous>, transform_indices = @transform_4, window_bounds = array<i64: 64, 1>}, {pipeline_mode = #tpu.pipeline_mode<synchronous>, transform_indices = @transform_5, window_bounds = array<i64: 32, 64>}, {pipeline_mode = #tpu.pipeline_mode<synchronous>, transform_indices = @transform_6, window_bounds = array<i64: 32, 1>}, {pipeline_mode = #tpu.pipeline_mode<synchronous>, transform_indices = @transform_7, window_bounds = array<i64: 32, 1>}, {pipeline_mode = #tpu.pipeline_mode<synchronous>, transform_indices = @transform_8, window_bounds = array<i64: 1, 1>}, {transform_indices = @transform_9, window_bounds = array<i64: 1, 128>}]} {
    %c0 = arith.constant 0 : index
    %c0_0 = arith.constant 0 : index
    %0 = vector.load %arg1[%c0, %c0_0] : memref<128x32xf32, #tpu.memory_space<vmem>>, vector<128x32xf32>
    %1 = arith.truncf %0 : vector<128x32xf32> to vector<128x32xbf16>
    %c0_1 = arith.constant 0 : index
    %c0_2 = arith.constant 0 : index
    %2 = vector.load %arg2[%c0_1, %c0_2] : memref<128x32xbf16, #tpu.memory_space<vmem>>, vector<128x32xbf16>
    %cst = arith.constant dense<0.000000e+00> : vector<128x128xf32>
    %3 = tpu.matmul %2, %1, %cst {dimension_numbers = #tpu.dot_dimension_numbers<[1], [1], [0], [0], [0, 0, 1, 0], [], []>} : vector<128x32xbf16>, vector<128x32xbf16>, vector<128x128xf32> -> vector<128x128xf32>
    %c0_3 = arith.constant 0 : index
    %c0_4 = arith.constant 0 : index
    %4 = vector.load %arg3[%c0_3, %c0_4] : memref<128x1xf32, #tpu.memory_space<vmem>>, vector<128x1xf32>
    %5 = vector.broadcast %4 : vector<128x1xf32> to vector<128x128xf32>
    %6 = arith.addf %3, %5 : vector<128x128xf32>
    %cst_5 = arith.constant 0.000000e+00 : f32
    %7 = vector.broadcast %cst_5 : f32 to vector<128x128xf32>
    %8 = arith.maximumf %6, %7 : vector<128x128xf32>
    %c0_6 = arith.constant 0 : index
    %c0_7 = arith.constant 0 : index
    %9 = vector.load %arg4[%c0_6, %c0_7] : memref<64x128xbf16, #tpu.memory_space<vmem>>, vector<64x128xbf16>
    %10 = arith.truncf %8 : vector<128x128xf32> to vector<128x128xbf16>
    %cst_8 = arith.constant dense<0.000000e+00> : vector<64x128xf32>
    %11 = tpu.matmul %9, %10, %cst_8 {dimension_numbers = #tpu.dot_dimension_numbers<[1], [0], [0], [1], [0, 0, 1, 1], [], []>} : vector<64x128xbf16>, vector<128x128xbf16>, vector<64x128xf32> -> vector<64x128xf32>
    %c0_9 = arith.constant 0 : index
    %c0_10 = arith.constant 0 : index
    %12 = vector.load %arg5[%c0_9, %c0_10] : memref<64x1xf32, #tpu.memory_space<vmem>>, vector<64x1xf32>
    %13 = vector.broadcast %12 : vector<64x1xf32> to vector<64x128xf32>
    %14 = arith.addf %11, %13 : vector<64x128xf32>
    %cst_11 = arith.constant 0.000000e+00 : f32
    %15 = vector.broadcast %cst_11 : f32 to vector<64x128xf32>
    %16 = arith.maximumf %14, %15 : vector<64x128xf32>
    %c0_12 = arith.constant 0 : index
    %c0_13 = arith.constant 0 : index
    %17 = vector.load %arg6[%c0_12, %c0_13] : memref<32x64xbf16, #tpu.memory_space<vmem>>, vector<32x64xbf16>
    %18 = arith.truncf %16 : vector<64x128xf32> to vector<64x128xbf16>
    %cst_14 = arith.constant dense<0.000000e+00> : vector<32x128xf32>
    %19 = tpu.matmul %17, %18, %cst_14 {dimension_numbers = #tpu.dot_dimension_numbers<[1], [0], [0], [1], [0, 0, 1, 1], [], []>} : vector<32x64xbf16>, vector<64x128xbf16>, vector<32x128xf32> -> vector<32x128xf32>
    %c0_15 = arith.constant 0 : index
    %c0_16 = arith.constant 0 : index
    %20 = vector.load %arg7[%c0_15, %c0_16] : memref<32x1xf32, #tpu.memory_space<vmem>>, vector<32x1xf32>
    %21 = vector.broadcast %20 : vector<32x1xf32> to vector<32x128xf32>
    %22 = arith.addf %19, %21 : vector<32x128xf32>
    %cst_17 = arith.constant 0.000000e+00 : f32
    %23 = vector.broadcast %cst_17 : f32 to vector<32x128xf32>
    %24 = arith.maximumf %22, %23 : vector<32x128xf32>
    %c0_18 = arith.constant 0 : index
    %c0_19 = arith.constant 0 : index
    %25 = vector.load %arg8[%c0_18, %c0_19] : memref<32x1xf32, #tpu.memory_space<vmem>>, vector<32x1xf32>
    %26 = vector.broadcast %25 : vector<32x1xf32> to vector<32x128xf32>
    %27 = arith.mulf %24, %26 : vector<32x128xf32>
    %cst_20 = arith.constant dense<0.000000e+00> : vector<128xf32>
    %28 = vector.multi_reduction <add>, %27, %cst_20 [0] : vector<32x128xf32> to vector<128xf32>
    %29 = vector.shape_cast %28 : vector<128xf32> to vector<1x128xf32>
    %c0_21 = arith.constant 0 : index
    %c0_22 = arith.constant 0 : index
    %30 = vector.load %arg9[%c0_21, %c0_22] : memref<1x1xf32, #tpu.memory_space<vmem>>, vector<1x1xf32>
    %31 = vector.broadcast %30 : vector<1x1xf32> to vector<1x128xf32>
    %32 = arith.addf %29, %31 : vector<1x128xf32>
    %cst_23 = arith.constant 0.000000e+00 : f32
    %33 = vector.broadcast %cst_23 : f32 to vector<1x128xf32>
    %34 = arith.subf %33, %32 : vector<1x128xf32>
    %35 = math.exp %34 : vector<1x128xf32>
    %cst_24 = arith.constant 1.000000e+00 : f32
    %36 = vector.broadcast %cst_24 : f32 to vector<1x128xf32>
    %37 = arith.addf %36, %35 : vector<1x128xf32>
    %38 = tpu.reciprocal %37 {approx = true} : vector<1x128xf32> -> vector<1x128xf32>
    %c0_25 = arith.constant 0 : index
    %c0_26 = arith.constant 0 : index
    %39 = vector.load %arg10[%c0_25, %c0_26] : memref<1x128xf32, #tpu.memory_space<vmem>>, vector<1x128xf32>
    tpu.vector_store %arg10[%c0_25, %c0_26], %38 {strides = array<i32>} : memref<1x128xf32, #tpu.memory_space<vmem>>, vector<1x128xf32>,
    return
  }
  func.func @transform_0(%arg0: i32) -> (i32, i32) {
    %c0_i32 = arith.constant 0 : i32
    %c0_i32_0 = arith.constant 0 : i32
    return %arg0, %c0_i32 : i32, i32
  }
  func.func @transform_1(%arg0: i32) -> (i32, i32) {
    %c0_i32 = arith.constant 0 : i32
    %c0_i32_0 = arith.constant 0 : i32
    %c0_i32_1 = arith.constant 0 : i32
    return %c0_i32, %c0_i32_0 : i32, i32
  }
  func.func @transform_2(%arg0: i32) -> (i32, i32) {
    %c0_i32 = arith.constant 0 : i32
    %c0_i32_0 = arith.constant 0 : i32
    %c0_i32_1 = arith.constant 0 : i32
    return %c0_i32, %c0_i32_0 : i32, i32
  }
  func.func @transform_3(%arg0: i32) -> (i32, i32) {
    %c0_i32 = arith.constant 0 : i32
    %c0_i32_0 = arith.constant 0 : i32
    %c0_i32_1 = arith.constant 0 : i32
    return %c0_i32, %c0_i32_0 : i32, i32
  }
  func.func @transform_4(%arg0: i32) -> (i32, i32) {
    %c0_i32 = arith.constant 0 : i32
    %c0_i32_0 = arith.constant 0 : i32
    %c0_i32_1 = arith.constant 0 : i32
    return %c0_i32, %c0_i32_0 : i32, i32
  }
  func.func @transform_5(%arg0: i32) -> (i32, i32) {
    %c0_i32 = arith.constant 0 : i32
    %c0_i32_0 = arith.constant 0 : i32
    %c0_i32_1 = arith.constant 0 : i32
    return %c0_i32, %c0_i32_0 : i32, i32
  }
  func.func @transform_6(%arg0: i32) -> (i32, i32) {
    %c0_i32 = arith.constant 0 : i32
    %c0_i32_0 = arith.constant 0 : i32
    %c0_i32_1 = arith.constant 0 : i32
    return %c0_i32, %c0_i32_0 : i32, i32
  }
  func.func @transform_7(%arg0: i32) -> (i32, i32) {
    %c0_i32 = arith.constant 0 : i32
    %c0_i32_0 = arith.constant 0 : i32
    %c0_i32_1 = arith.constant 0 : i32
    return %c0_i32, %c0_i32_0 : i32, i32
  }
  func.func @transform_8(%arg0: i32) -> (i32, i32) {
    %c0_i32 = arith.constant 0 : i32
    %c0_i32_0 = arith.constant 0 : i32
    %c0_i32_1 = arith.constant 0 : i32
    return %c0_i32, %c0_i32_0 : i32, i32
  }
  func.func @transform_9(%arg0: i32) -> (i32, i32) {
    %c0_i32 = arith.constant 0 : i32
    %c0_i32_0 = arith.constant 0 : i32
    return %c0_i32, %arg0 : i32, i32
  }
}

</mosaic_0001>

<llo_original>
// kernel: deep_mlp_forward.1
$region0: #{deep_mlp_forward.1}
  #allocation0 [shape = 'u32[]', space=smem, size = 0x4, offset = 0x4, fixed_abs, tag = 'smem constant byte address 0x4 - core index']
  #allocation1 [shape = 'u32[144,128]{1,0:T(1,128)}', space=vmem, size = 0x12000, scoped, tag = 'internal scratch']
  #allocation2 [shape = 'f32[1,1]{1,0:T(1,128)S(1)}', space=vmem, size = 0x200, scoped, tag = 'scoped memory for deep_mlp_forward.1']
  %s0 = inlined_call_operand.vmem [shape: f32[8,32], index: 0, kind: input, shape index: {}]
  %s1 = inlined_call_operand.vmem [shape: bf16[128,32], index: 1, kind: input, shape index: {}]
  %s2 = inlined_call_operand.vmem [shape: f32[128,1], index: 2, kind: input, shape index: {}]
  %s3 = inlined_call_operand.vmem [shape: bf16[64,128], index: 3, kind: input, shape index: {}]
  %s4 = inlined_call_operand.vmem [shape: f32[64,1], index: 4, kind: input, shape index: {}]
  %s5 = inlined_call_operand.vmem [shape: bf16[32,64], index: 5, kind: input, shape index: {}]
  %s6 = inlined_call_operand.vmem [shape: f32[32,1], index: 6, kind: input, shape index: {}]
  %s7 = inlined_call_operand.vmem [shape: f32[32,1], index: 7, kind: input, shape index: {}]
  %s8 = inlined_call_operand.<no memory space> [shape: f32[1,1], index: 8, kind: input, shape index: {}]
  %s9 = inlined_call_operand.vmem [shape: f32[1,128], index: 9, kind: output, shape index: {}]
  %s10 = sld [smem:[#allocation0]]
  $region46: #{deep_mlp_forward.1} parent=0
    _
  %s12 = ssub.s32 1, %s10
  %s13 = scalar_select 0, %s12, %s10
  %v14 = vstv %s8
  %15 = vst [vmem:[#allocation2] sm:$0x1] %v14
  // Predicated region
  $region2: #{deep_mlp_forward.1} parent=0 // pred_check
    _
  $region3: #{deep_mlp_forward.1} parent=0 // pred_check_branch
    %17 = sbr.rel (0) target = $region5
  $region4: #{deep_mlp_forward.1} parent=0 // pred_region
    _
  $region5: #{deep_mlp_forward.1} parent=0 // pred_fallthru
    _
  // Predicated region
  $region6: #{deep_mlp_forward.1} parent=0 // pred_check
    _
  $region7: #{deep_mlp_forward.1} parent=0 // pred_check_branch
    %19 = sbr.rel (0) target = $region9
  $region8: #{deep_mlp_forward.1} parent=0 // pred_region
    _
  $region9: #{deep_mlp_forward.1} parent=0 // pred_fallthru
    _
  // Predicated region
  $region10: #{deep_mlp_forward.1} parent=0 // pred_check
    _
  $region11: #{deep_mlp_forward.1} parent=0 // pred_check_branch
    %21 = sbr.rel (0) target = $region13
  $region12: #{deep_mlp_forward.1} parent=0 // pred_region
    _
  $region13: #{deep_mlp_forward.1} parent=0 // pred_fallthru
    _
  // Predicated region
  $region14: #{deep_mlp_forward.1} parent=0 // pred_check
    _
  $region15: #{deep_mlp_forward.1} parent=0 // pred_check_branch
    %23 = sbr.rel (0) target = $region17
  $region16: #{deep_mlp_forward.1} parent=0 // pred_region
    _
  $region17: #{deep_mlp_forward.1} parent=0 // pred_fallthru
    _
  // Predicated region
  $region18: #{deep_mlp_forward.1} parent=0 // pred_check
    _
  $region19: #{deep_mlp_forward.1} parent=0 // pred_check_branch
    %25 = sbr.rel (0) target = $region21
  $region20: #{deep_mlp_forward.1} parent=0 // pred_region
    _
  $region21: #{deep_mlp_forward.1} parent=0 // pred_fallthru
    _
  // Predicated region
  $region22: #{deep_mlp_forward.1} parent=0 // pred_check
    _
  $region23: #{deep_mlp_forward.1} parent=0 // pred_check_branch
    %27 = sbr.rel (0) target = $region25
  $region24: #{deep_mlp_forward.1} parent=0 // pred_region
    _
  $region25: #{deep_mlp_forward.1} parent=0 // pred_fallthru
    _
  // Predicated region
  $region26: #{deep_mlp_forward.1} parent=0 // pred_check
    _
  $region27: #{deep_mlp_forward.1} parent=0 // pred_check_branch
    %29 = sbr.rel (0) target = $region29
  $region28: #{deep_mlp_forward.1} parent=0 // pred_region
    _
  $region29: #{deep_mlp_forward.1} parent=0 // pred_fallthru
    _
  // Predicated region
  $region30: #{deep_mlp_forward.1} parent=0 // pred_check
    _
  $region31: #{deep_mlp_forward.1} parent=0 // pred_check_branch
    %31 = sbr.rel (0) target = $region33
  $region32: #{deep_mlp_forward.1} parent=0 // pred_region
    _
  $region33: #{deep_mlp_forward.1} parent=0 // pred_fallthru
    _
  // Predicated region
  $region34: #{deep_mlp_forward.1} parent=0 // pred_check
    _
  $region35: #{deep_mlp_forward.1} parent=0 // pred_check_branch
    %33 = sbr.rel (0) target = $region37
  $region36: #{deep_mlp_forward.1} parent=0 // pred_region
    _
  $region37: #{deep_mlp_forward.1} parent=0 // pred_fallthru
    _
  %v35 = vld [vmem:[%s0] sm:$0xff]
  %v36 = vld [vmem:[%s0 + $0x8] sm:$0xff]
  %v37 = vld [vmem:[%s0 + $0x10] sm:$0xff]
  %v38 = vld [vmem:[%s0 + $0x18] sm:$0xff]
  %v39 = vld [vmem:[%s0 + $0x20] sm:$0xff]
  %v40 = vld [vmem:[%s0 + $0x28] sm:$0xff]
  %v41 = vld [vmem:[%s0 + $0x30] sm:$0xff]
  %v42 = vld [vmem:[%s0 + $0x38] sm:$0xff]
  %v43 = vld [vmem:[%s0 + $0x40] sm:$0xff]
  %v44 = vld [vmem:[%s0 + $0x48] sm:$0xff]
  %v45 = vld [vmem:[%s0 + $0x50] sm:$0xff]
  %v46 = vld [vmem:[%s0 + $0x58] sm:$0xff]
  %v47 = vld [vmem:[%s0 + $0x60] sm:$0xff]
  %v48 = vld [vmem:[%s0 + $0x68] sm:$0xff]
  %v49 = vld [vmem:[%s0 + $0x70] sm:$0xff]
  %v50 = vld [vmem:[%s0 + $0x78] sm:$0xff]
  %v51 = vpack.c.bf16 %v36, %v35
  %v52 = vpack.c.bf16 %v38, %v37
  %v53 = vpack.c.bf16 %v40, %v39
  %v54 = vpack.c.bf16 %v42, %v41
  %v55 = vpack.c.bf16 %v44, %v43
  %v56 = vpack.c.bf16 %v46, %v45
  %v57 = vpack.c.bf16 %v48, %v47
  %v58 = vpack.c.bf16 %v50, %v49
  %v59 = vld [vmem:[%s1] sm:$0xf]
  %v60 = vld [vmem:[%s1 + $0x4] sm:$0xf]
  %v61 = vld [vmem:[%s1 + $0x8] sm:$0xf]
  %v62 = vld [vmem:[%s1 + $0xc] sm:$0xf]
  %v63 = vld [vmem:[%s1 + $0x10] sm:$0xf]
  %v64 = vld [vmem:[%s1 + $0x14] sm:$0xf]
  %v65 = vld [vmem:[%s1 + $0x18] sm:$0xf]
  %v66 = vld [vmem:[%s1 + $0x1c] sm:$0xf]
  %v67 = vld [vmem:[%s1 + $0x20] sm:$0xf]
  %v68 = vld [vmem:[%s1 + $0x24] sm:$0xf]
  %v69 = vld [vmem:[%s1 + $0x28] sm:$0xf]
  %v70 = vld [vmem:[%s1 + $0x2c] sm:$0xf]
  %v71 = vld [vmem:[%s1 + $0x30] sm:$0xf]
  %v72 = vld [vmem:[%s1 + $0x34] sm:$0xf]
  %v73 = vld [vmem:[%s1 + $0x38] sm:$0xf]
  %v74 = vld [vmem:[%s1 + $0x3c] sm:$0xf]
  %v75 = vld [vmem:[%s2] sm:$0xff]
  %v76 = vld [vmem:[%s2 + $0x8] sm:$0xff]
  %v77 = vld [vmem:[%s2 + $0x10] sm:$0xff]
  %v78 = vld [vmem:[%s2 + $0x18] sm:$0xff]
  %v79 = vld [vmem:[%s2 + $0x20] sm:$0xff]
  %v80 = vld [vmem:[%s2 + $0x28] sm:$0xff]
  %v81 = vld [vmem:[%s2 + $0x30] sm:$0xff]
  %v82 = vld [vmem:[%s2 + $0x38] sm:$0xff]
  %v83 = vld [vmem:[%s2 + $0x40] sm:$0xff]
  %v84 = vld [vmem:[%s2 + $0x48] sm:$0xff]
  %v85 = vld [vmem:[%s2 + $0x50] sm:$0xff]
  %v86 = vld [vmem:[%s2 + $0x58] sm:$0xff]
  %v87 = vld [vmem:[%s2 + $0x60] sm:$0xff]
  %v88 = vld [vmem:[%s2 + $0x68] sm:$0xff]
  %v89 = vld [vmem:[%s2 + $0x70] sm:$0xff]
  %v90 = vld [vmem:[%s2 + $0x78] sm:$0xff]
  %92 = vset.pattern.permute.xlu0 0
  %93 = vperm.xlu0 %92, %v75
  %v94 = vpop.permute.xlu0 %93
  %97 = vset.pattern.permute.xlu0 0
  %98 = vperm.xlu0 %97, %v76
  %v99 = vpop.permute.xlu0 %98
  %102 = vset.pattern.permute.xlu0 0
  %103 = vperm.xlu0 %102, %v77
  %v104 = vpop.permute.xlu0 %103
  %107 = vset.pattern.permute.xlu0 0
  %108 = vperm.xlu0 %107, %v78
  %v109 = vpop.permute.xlu0 %108
  %112 = vset.pattern.permute.xlu0 0
  %113 = vperm.xlu0 %112, %v79
  %v114 = vpop.permute.xlu0 %113
  %117 = vset.pattern.permute.xlu0 0
  %118 = vperm.xlu0 %117, %v80
  %v119 = vpop.permute.xlu0 %118
  %122 = vset.pattern.permute.xlu0 0
  %123 = vperm.xlu0 %122, %v81
  %v124 = vpop.permute.xlu0 %123
  %127 = vset.pattern.permute.xlu0 0
  %128 = vperm.xlu0 %127, %v82
  %v129 = vpop.permute.xlu0 %128
  %132 = vset.pattern.permute.xlu0 0
  %133 = vperm.xlu0 %132, %v83
  %v134 = vpop.permute.xlu0 %133
  %137 = vset.pattern.permute.xlu0 0
  %138 = vperm.xlu0 %137, %v84
  %v139 = vpop.permute.xlu0 %138
  %142 = vset.pattern.permute.xlu0 0
  %143 = vperm.xlu0 %142, %v85
  %v144 = vpop.permute.xlu0 %143
  %147 = vset.pattern.permute.xlu0 0
  %148 = vperm.xlu0 %147, %v86
  %v149 = vpop.permute.xlu0 %148
  %152 = vset.pattern.permute.xlu0 0
  %153 = vperm.xlu0 %152, %v87
  %v154 = vpop.permute.xlu0 %153
  %157 = vset.pattern.permute.xlu0 0
  %158 = vperm.xlu0 %157, %v88
  %v159 = vpop.permute.xlu0 %158
  %162 = vset.pattern.permute.xlu0 0
  %163 = vperm.xlu0 %162, %v89
  %v164 = vpop.permute.xlu0 %163
  %167 = vset.pattern.permute.xlu0 0
  %168 = vperm.xlu0 %167, %v90
  %v169 = vpop.permute.xlu0 %168
  %v187 = vunpack.c.l.b16 %v59
  %v188 = vunpack.c.l.b16 %v60
  %v189 = vunpack.c.l.b16 %v61
  %v190 = vunpack.c.l.b16 %v62
  %v191 = vunpack.c.l.b16 %v63
  %v192 = vunpack.c.l.b16 %v64
  %v193 = vunpack.c.l.b16 %v65
  %v194 = vunpack.c.l.b16 %v66
  %v195 = vunpack.c.l.b16 %v67
  %v196 = vunpack.c.l.b16 %v68
  %v197 = vunpack.c.l.b16 %v69
  %v198 = vunpack.c.l.b16 %v70
  %v199 = vunpack.c.l.b16 %v71
  %v200 = vunpack.c.l.b16 %v72
  %v201 = vunpack.c.l.b16 %v73
  %v202 = vunpack.c.l.b16 %v74
  %v203 = vpack.c.b16 %v188, %v187
  %v204 = vpack.c.b16 %v190, %v189
  %v205 = vpack.c.b16 %v192, %v191
  %v206 = vpack.c.b16 %v194, %v193
  %v207 = vpack.c.b16 %v196, %v195
  %v208 = vpack.c.b16 %v198, %v197
  %v209 = vpack.c.b16 %v200, %v199
  %v210 = vpack.c.b16 %v202, %v201
  %vm211 = vcmask 261120
  %v213 = vsel %vm211, %v203, 0
  %v216 = vsel %vm211, %v204, 0
  %v219 = vsel %vm211, %v205, 0
  %v222 = vsel %vm211, %v206, 0
  %v225 = vsel %vm211, %v207, 0
  %v228 = vsel %vm211, %v208, 0
  %v231 = vsel %vm211, %v209, 0
  %v234 = vsel %vm211, %v210, 0
  %v237 = vsel %vm211, %v51, 0
  %v240 = vsel %vm211, %v52, 0
  %v243 = vsel %vm211, %v53, 0
  %v246 = vsel %vm211, %v54, 0
  %v249 = vsel %vm211, %v55, 0
  %v252 = vsel %vm211, %v56, 0
  %v255 = vsel %vm211, %v57, 0
  %v258 = vsel %vm211, %v58, 0
  %260 = vmatprep.subr.bf16.mxu0 0
  %261 = vmatpush1.bf16.xpose.msra.mxu0 %v258
  %262 = vmatprep.subr.bf16.mxu0 0
  %263 = vmatpush1.bf16.xpose.msra.mxu0 %v255
  %264 = vmatprep.subr.bf16.mxu0 0
  %265 = vmatpush1.bf16.xpose.msra.mxu0 %v252
  %266 = vmatprep.subr.bf16.mxu0 0
  %267 = vmatpush1.bf16.xpose.msra.mxu0 %v249
  %268 = vmatprep.subr.bf16.mxu0 0
  %269 = vmatpush1.bf16.xpose.msra.mxu0 %v246
  %270 = vmatprep.subr.bf16.mxu0 0
  %271 = vmatpush1.bf16.xpose.msra.mxu0 %v243
  %272 = vmatprep.subr.bf16.mxu0 0
  %273 = vmatpush1.bf16.xpose.msra.mxu0 %v240
  %274 = vmatprep.subr.bf16.mxu0 0
  %275 = vmatpush1.bf16.xpose.msra.mxu0 %v237
  %276 = vmatprep.subr.bf16.mxu0 0
  %277 = vmatpush2.bf16.xpose.msra.mxu0 0
  %278 = vmatprep.subr.bf16.mxu0 0
  %279 = vmatpush2.bf16.xpose.msra.mxu0 0
  %280 = vmatprep.subr.bf16.mxu0 0
  %281 = vmatpush2.bf16.xpose.msra.mxu0 0
  %282 = vmatprep.subr.bf16.mxu0 0
  %283 = vmatpush2.bf16.xpose.msra.mxu0 0
  %284 = vmatprep.subr.bf16.mxu0 0
  %285 = vmatpush2.bf16.xpose.msra.mxu0 0
  %286 = vmatprep.subr.bf16.mxu0 0
  %287 = vmatpush2.bf16.xpose.msra.mxu0 0
  %288 = vmatprep.subr.bf16.mxu0 0
  %289 = vmatpush2.bf16.xpose.msra.mxu0 0
  %290 = vmatprep.subr.bf16.mxu0 0
  %291 = vmatpush2.bf16.xpose.msra.mxu0 0
  %292 = vmatprep.mubr.bf16.mxu0 0
  %293 = vmatmul.mubr.bf16.gmra.mxu0 %v213
  %v294 = vpop.f32.mrf.mxu0
  %v295 = vadd.f32 %v94, %v294
  %v296 = vpop.f32.mrf.mxu0
  %v297 = vpop.f32.mrf.mxu0
  %v298 = vadd.f32 %v99, %v297
  %v299 = vpop.f32.mrf.mxu0
  %300 = vmatprep.mubr.bf16.mxu0 0
  %301 = vmatmul.mubr.bf16.gmra.mxu0 %v216
  %v302 = vpop.f32.mrf.mxu0
  %v303 = vadd.f32 %v104, %v302
  %v304 = vpop.f32.mrf.mxu0
  %v305 = vpop.f32.mrf.mxu0
  %v306 = vadd.f32 %v109, %v305
  %v307 = vpop.f32.mrf.mxu0
  %308 = vmatprep.mubr.bf16.mxu0 0
  %309 = vmatmul.mubr.bf16.gmra.mxu0 %v219
  %v310 = vpop.f32.mrf.mxu0
  %v311 = vadd.f32 %v114, %v310
  %v312 = vpop.f32.mrf.mxu0
  %v313 = vpop.f32.mrf.mxu0
  %v314 = vadd.f32 %v119, %v313
  %v315 = vpop.f32.mrf.mxu0
  %316 = vmatprep.mubr.bf16.mxu0 0
  %317 = vmatmul.mubr.bf16.gmra.mxu0 %v222
  %v318 = vpop.f32.mrf.mxu0
  %v319 = vadd.f32 %v124, %v318
  %v320 = vpop.f32.mrf.mxu0
  %v321 = vpop.f32.mrf.mxu0
  %v322 = vadd.f32 %v129, %v321
  %v323 = vpop.f32.mrf.mxu0
  %324 = vmatprep.mubr.bf16.mxu0 0
  %325 = vmatmul.mubr.bf16.gmra.mxu0 %v225
  %v326 = vpop.f32.mrf.mxu0
  %v327 = vadd.f32 %v134, %v326
  %v328 = vpop.f32.mrf.mxu0
  %v329 = vpop.f32.mrf.mxu0
  %v330 = vadd.f32 %v139, %v329
  %v331 = vpop.f32.mrf.mxu0
  %332 = vmatprep.mubr.bf16.mxu0 0
  %333 = vmatmul.mubr.bf16.gmra.mxu0 %v228
  %v334 = vpop.f32.mrf.mxu0
  %v335 = vadd.f32 %v144, %v334
  %v336 = vpop.f32.mrf.mxu0
  %v337 = vpop.f32.mrf.mxu0
  %v338 = vadd.f32 %v149, %v337
  %v339 = vpop.f32.mrf.mxu0
  %340 = vmatprep.mubr.bf16.mxu0 0
  %341 = vmatmul.mubr.bf16.gmra.mxu0 %v231
  %v342 = vpop.f32.mrf.mxu0
  %v343 = vadd.f32 %v154, %v342
  %v344 = vpop.f32.mrf.mxu0
  %v345 = vpop.f32.mrf.mxu0
  %v346 = vadd.f32 %v159, %v345
  %v347 = vpop.f32.mrf.mxu0
  %348 = vmatprep.mubr.bf16.mxu0 0
  %349 = vmatmul.mubr.bf16.gmra.mxu0 %v234
  %v350 = vpop.f32.mrf.mxu0
  %v351 = vadd.f32 %v164, %v350
  %v352 = vpop.f32.mrf.mxu0
  %v353 = vpop.f32.mrf.mxu0
  %v354 = vadd.f32 %v169, %v353
  %v355 = vpop.f32.mrf.mxu0
  %356 = vdwg.mxu0
  %v357 = vmax.f32 %v295, 0.0
  %v358 = vmax.f32 %v298, 0.0
  %v359 = vmax.f32 %v303, 0.0
  %v360 = vmax.f32 %v306, 0.0
  %v361 = vmax.f32 %v311, 0.0
  %v362 = vmax.f32 %v314, 0.0
  %v363 = vmax.f32 %v319, 0.0
  %v364 = vmax.f32 %v322, 0.0
  %v365 = vmax.f32 %v327, 0.0
  %v366 = vmax.f32 %v330, 0.0
  %v367 = vmax.f32 %v335, 0.0
  %v368 = vmax.f32 %v338, 0.0
  %v369 = vmax.f32 %v343, 0.0
  %v370 = vmax.f32 %v346, 0.0
  %v371 = vmax.f32 %v351, 0.0
  %v372 = vmax.f32 %v354, 0.0
  %v373 = vld [vmem:[%s3] sm:$0xf]
  %v374 = vld [vmem:[%s3 + $0x4] sm:$0xf]
  %v375 = vld [vmem:[%s3 + $0x8] sm:$0xf]
  %v376 = vld [vmem:[%s3 + $0xc] sm:$0xf]
  %v377 = vld [vmem:[%s3 + $0x10] sm:$0xf]
  %v378 = vld [vmem:[%s3 + $0x14] sm:$0xf]
  %v379 = vld [vmem:[%s3 + $0x18] sm:$0xf]
  %v380 = vld [vmem:[%s3 + $0x1c] sm:$0xf]
  %v381 = vpack.c.bf16 %v358, %v357
  %v382 = vpack.c.bf16 %v360, %v359
  %v383 = vpack.c.bf16 %v362, %v361
  %v384 = vpack.c.bf16 %v364, %v363
  %v385 = vpack.c.bf16 %v366, %v365
  %v386 = vpack.c.bf16 %v368, %v367
  %v387 = vpack.c.bf16 %v370, %v369
  %v388 = vpack.c.bf16 %v372, %v371
  %v389 = vld [vmem:[%s4] sm:$0xff]
  %v390 = vld [vmem:[%s4 + $0x8] sm:$0xff]
  %v391 = vld [vmem:[%s4 + $0x10] sm:$0xff]
  %v392 = vld [vmem:[%s4 + $0x18] sm:$0xff]
  %v393 = vld [vmem:[%s4 + $0x20] sm:$0xff]
  %v394 = vld [vmem:[%s4 + $0x28] sm:$0xff]
  %v395 = vld [vmem:[%s4 + $0x30] sm:$0xff]
  %v396 = vld [vmem:[%s4 + $0x38] sm:$0xff]
  %398 = vset.pattern.permute.xlu0 0
  %399 = vperm.xlu0 %398, %v389
  %v400 = vpop.permute.xlu0 %399
  %403 = vset.pattern.permute.xlu0 0
  %404 = vperm.xlu0 %403, %v390
  %v405 = vpop.permute.xlu0 %404
  %408 = vset.pattern.permute.xlu0 0
  %409 = vperm.xlu0 %408, %v391
  %v410 = vpop.permute.xlu0 %409
  %413 = vset.pattern.permute.xlu0 0
  %414 = vperm.xlu0 %413, %v392
  %v415 = vpop.permute.xlu0 %414
  %418 = vset.pattern.permute.xlu0 0
  %419 = vperm.xlu0 %418, %v393
  %v420 = vpop.permute.xlu0 %419
  %423 = vset.pattern.permute.xlu0 0
  %424 = vperm.xlu0 %423, %v394
  %v425 = vpop.permute.xlu0 %424
  %428 = vset.pattern.permute.xlu0 0
  %429 = vperm.xlu0 %428, %v395
  %v430 = vpop.permute.xlu0 %429
  %433 = vset.pattern.permute.xlu0 0
  %434 = vperm.xlu0 %433, %v396
  %v435 = vpop.permute.xlu0 %434
  %v445 = vunpack.c.l.b16 %v373
  %v446 = vunpack.c.l.b16 %v374
  %v447 = vunpack.c.l.b16 %v375
  %v448 = vunpack.c.l.b16 %v376
  %v449 = vunpack.c.l.b16 %v377
  %v450 = vunpack.c.l.b16 %v378
  %v451 = vunpack.c.l.b16 %v379
  %v452 = vunpack.c.l.b16 %v380
  %v453 = vpack.c.b16 %v446, %v445
  %v454 = vpack.c.b16 %v448, %v447
  %v455 = vpack.c.b16 %v450, %v449
  %v456 = vpack.c.b16 %v452, %v451
  %461 = vmatprep.subr.bf16.mxu0 0
  %462 = vmatpush1.bf16.msra.mxu0 %v388
  %463 = vmatprep.subr.bf16.mxu0 0
  %464 = vmatpush1.bf16.msra.mxu0 %v387
  %465 = vmatprep.subr.bf16.mxu0 0
  %466 = vmatpush1.bf16.msra.mxu0 %v386
  %467 = vmatprep.subr.bf16.mxu0 0
  %468 = vmatpush1.bf16.msra.mxu0 %v385
  %469 = vmatprep.subr.bf16.mxu0 0
  %470 = vmatpush1.bf16.msra.mxu0 %v384
  %471 = vmatprep.subr.bf16.mxu0 0
  %472 = vmatpush1.bf16.msra.mxu0 %v383
  %473 = vmatprep.subr.bf16.mxu0 0
  %474 = vmatpush1.bf16.msra.mxu0 %v382
  %475 = vmatprep.subr.bf16.mxu0 0
  %476 = vmatpush1.bf16.msra.mxu0 %v381
  %477 = vmatprep.subr.bf16.mxu0 0
  %478 = vmatpush2.bf16.msra.mxu0 0
  %479 = vmatprep.subr.bf16.mxu0 0
  %480 = vmatpush2.bf16.msra.mxu0 0
  %481 = vmatprep.subr.bf16.mxu0 0
  %482 = vmatpush2.bf16.msra.mxu0 0
  %483 = vmatprep.subr.bf16.mxu0 0
  %484 = vmatpush2.bf16.msra.mxu0 0
  %485 = vmatprep.subr.bf16.mxu0 0
  %486 = vmatpush2.bf16.msra.mxu0 0
  %487 = vmatprep.subr.bf16.mxu0 0
  %488 = vmatpush2.bf16.msra.mxu0 0
  %489 = vmatprep.subr.bf16.mxu0 0
  %490 = vmatpush2.bf16.msra.mxu0 0
  %491 = vmatprep.subr.bf16.mxu0 0
  %492 = vmatpush2.bf16.msra.mxu0 0
  %493 = vmatprep.mubr.bf16.mxu0 0
  %494 = vmatmul.mubr.bf16.gmra.mxu0 %v453
  %v495 = vpop.f32.mrf.mxu0
  %v496 = vadd.f32 %v400, %v495
  %v497 = vpop.f32.mrf.mxu0
  %v498 = vpop.f32.mrf.mxu0
  %v499 = vadd.f32 %v405, %v498
  %v500 = vpop.f32.mrf.mxu0
  %501 = vmatprep.mubr.bf16.mxu0 0
  %502 = vmatmul.mubr.bf16.gmra.mxu0 %v454
  %v503 = vpop.f32.mrf.mxu0
  %v504 = vadd.f32 %v410, %v503
  %v505 = vpop.f32.mrf.mxu0
  %v506 = vpop.f32.mrf.mxu0
  %v507 = vadd.f32 %v415, %v506
  %v508 = vpop.f32.mrf.mxu0
  %509 = vmatprep.mubr.bf16.mxu0 0
  %510 = vmatmul.mubr.bf16.gmra.mxu0 %v455
  %v511 = vpop.f32.mrf.mxu0
  %v512 = vadd.f32 %v420, %v511
  %v513 = vpop.f32.mrf.mxu0
  %v514 = vpop.f32.mrf.mxu0
  %v515 = vadd.f32 %v425, %v514
  %v516 = vpop.f32.mrf.mxu0
  %517 = vmatprep.mubr.bf16.mxu0 0
  %518 = vmatmul.mubr.bf16.gmra.mxu0 %v456
  %v519 = vpop.f32.mrf.mxu0
  %v520 = vadd.f32 %v430, %v519
  %v521 = vpop.f32.mrf.mxu0
  %v522 = vpop.f32.mrf.mxu0
  %v523 = vadd.f32 %v435, %v522
  %v524 = vpop.f32.mrf.mxu0
  %525 = vdwg.mxu0
  %v526 = vmax.f32 %v496, 0.0
  %v527 = vmax.f32 %v499, 0.0
  %v528 = vmax.f32 %v504, 0.0
  %v529 = vmax.f32 %v507, 0.0
  %v530 = vmax.f32 %v512, 0.0
  %v531 = vmax.f32 %v515, 0.0
  %v532 = vmax.f32 %v520, 0.0
  %v533 = vmax.f32 %v523, 0.0
  %v534 = vld [vmem:[%s5] sm:$0xf]
  %v535 = vld [vmem:[%s5 + $0x4] sm:$0xf]
  %v536 = vld [vmem:[%s5 + $0x8] sm:$0xf]
  %v537 = vld [vmem:[%s5 + $0xc] sm:$0xf]
  %v538 = vpack.c.bf16 %v527, %v526
  %v539 = vpack.c.bf16 %v529, %v528
  %v540 = vpack.c.bf16 %v531, %v530
  %v541 = vpack.c.bf16 %v533, %v532
  %v542 = vld [vmem:[%s6] sm:$0xff]
  %v543 = vld [vmem:[%s6 + $0x8] sm:$0xff]
  %v544 = vld [vmem:[%s6 + $0x10] sm:$0xff]
  %v545 = vld [vmem:[%s6 + $0x18] sm:$0xff]
  %547 = vset.pattern.permute.xlu0 0
  %548 = vperm.xlu0 %547, %v542
  %v549 = vpop.permute.xlu0 %548
  %552 = vset.pattern.permute.xlu0 0
  %553 = vperm.xlu0 %552, %v543
  %v554 = vpop.permute.xlu0 %553
  %557 = vset.pattern.permute.xlu0 0
  %558 = vperm.xlu0 %557, %v544
  %v559 = vpop.permute.xlu0 %558
  %562 = vset.pattern.permute.xlu0 0
  %563 = vperm.xlu0 %562, %v545
  %v564 = vpop.permute.xlu0 %563
  %v570 = vunpack.c.l.b16 %v534
  %v571 = vunpack.c.l.b16 %v535
  %v572 = vunpack.c.l.b16 %v536
  %v573 = vunpack.c.l.b16 %v537
  %v574 = vpack.c.b16 %v571, %v570
  %v575 = vpack.c.b16 %v573, %v572
  %vm576 = vcmask 523264
  %v578 = vsel %vm576, %v574, 0
  %v581 = vsel %vm576, %v575, 0
  %583 = vmatprep.subr.bf16.mxu0 0
  %584 = vmatpush1.bf16.msra.mxu0 0
  %585 = vmatprep.subr.bf16.mxu0 0
  %586 = vmatpush1.bf16.msra.mxu0 0
  %587 = vmatprep.subr.bf16.mxu0 0
  %588 = vmatpush1.bf16.msra.mxu0 0
  %589 = vmatprep.subr.bf16.mxu0 0
  %590 = vmatpush1.bf16.msra.mxu0 0
  %591 = vmatprep.subr.bf16.mxu0 0
  %592 = vmatpush1.bf16.msra.mxu0 %v541
  %593 = vmatprep.subr.bf16.mxu0 0
  %594 = vmatpush1.bf16.msra.mxu0 %v540
  %595 = vmatprep.subr.bf16.mxu0 0
  %596 = vmatpush1.bf16.msra.mxu0 %v539
  %597 = vmatprep.subr.bf16.mxu0 0
  %598 = vmatpush1.bf16.msra.mxu0 %v538
  %599 = vmatprep.subr.bf16.mxu0 0
  %600 = vmatpush2.bf16.msra.mxu0 0
  %601 = vmatprep.subr.bf16.mxu0 0
  %602 = vmatpush2.bf16.msra.mxu0 0
  %603 = vmatprep.subr.bf16.mxu0 0
  %604 = vmatpush2.bf16.msra.mxu0 0
  %605 = vmatprep.subr.bf16.mxu0 0
  %606 = vmatpush2.bf16.msra.mxu0 0
  %607 = vmatprep.subr.bf16.mxu0 0
  %608 = vmatpush2.bf16.msra.mxu0 0
  %609 = vmatprep.subr.bf16.mxu0 0
  %610 = vmatpush2.bf16.msra.mxu0 0
  %611 = vmatprep.subr.bf16.mxu0 0
  %612 = vmatpush2.bf16.msra.mxu0 0
  %613 = vmatprep.subr.bf16.mxu0 0
  %614 = vmatpush2.bf16.msra.mxu0 0
  %615 = vmatprep.mubr.bf16.mxu0 0
  %616 = vmatmul.mubr.bf16.gmra.mxu0 %v578
  %v617 = vpop.f32.mrf.mxu0
  %v618 = vadd.f32 %v549, %v617
  %v619 = vpop.f32.mrf.mxu0
  %v620 = vpop.f32.mrf.mxu0
  %v621 = vadd.f32 %v554, %v620
  %v622 = vpop.f32.mrf.mxu0
  %623 = vmatprep.mubr.bf16.mxu0 0
  %624 = vmatmul.mubr.bf16.gmra.mxu0 %v581
  %v625 = vpop.f32.mrf.mxu0
  %v626 = vadd.f32 %v559, %v625
  %v627 = vpop.f32.mrf.mxu0
  %v628 = vpop.f32.mrf.mxu0
  %v629 = vadd.f32 %v564, %v628
  %v630 = vpop.f32.mrf.mxu0
  %631 = vdwg.mxu0
  %v632 = vmax.f32 %v618, 0.0
  %v633 = vmax.f32 %v621, 0.0
  %v634 = vmax.f32 %v626, 0.0
  %v635 = vmax.f32 %v629, 0.0
  %v636 = vld [vmem:[%s7] sm:$0xff]
  %v637 = vld [vmem:[%s7 + $0x8] sm:$0xff]
  %v638 = vld [vmem:[%s7 + $0x10] sm:$0xff]
  %v639 = vld [vmem:[%s7 + $0x18] sm:$0xff]
  %641 = vset.pattern.permute.xlu0 0
  %642 = vperm.xlu0 %641, %v636
  %v643 = vpop.permute.xlu0 %642
  %646 = vset.pattern.permute.xlu0 0
  %647 = vperm.xlu0 %646, %v637
  %v648 = vpop.permute.xlu0 %647
  %651 = vset.pattern.permute.xlu0 0
  %652 = vperm.xlu0 %651, %v638
  %v653 = vpop.permute.xlu0 %652
  %656 = vset.pattern.permute.xlu0 0
  %657 = vperm.xlu0 %656, %v639
  %v658 = vpop.permute.xlu0 %657
  %v660 = vmul.f32 %v632, %v643
  %v661 = vmul.f32 %v633, %v648
  %v662 = vmul.f32 %v634, %v653
  %v663 = vmul.f32 %v635, %v658
  %v664 = vadd.f32 %v660, %v661
  %v665 = vadd.f32 %v664, %v662
  %v666 = vadd.f32 %v665, %v663
  %v667 = vrot.slane %v666, 4
  %v668 = vadd.f32 %v666, %v667
  %v669 = vrot.slane %v668, 2
  %v670 = vadd.f32 %v668, %v669
  %v671 = vrot.slane %v670, 1
  %v672 = vadd.f32 %v670, %v671
  %v673 = vld [vmem:[#allocation2] sm:$0x1]
  %675 = vset.pattern.permute.xlu0 0
  %676 = vperm.xlu0 %675, %v673
  %v677 = vpop.permute.xlu0 %676
  %v679 = vlaneseq
  %v680 = vshrl.u32 %v679, 7
  %v681 = vsub.s32 0, %v680
  %v682 = vrot.slane %v677, %v681
  %v683 = vadd.f32 %v672, %v682
  %v684 = vsub.f32 0.0, %v683
  %v685 = vmul.f32 %v684, 1.442695
  %v686 = vpow.pop %v685
  %v687 = vadd.f32 %v686, 1.0
  %v688 = vrcp.pop %v687
  %689 = vst [vmem:[%s9] sm:$0x1] %v688
  // Predicated region
  $region38: #{deep_mlp_forward.1} parent=0 // pred_check
    _
  $region39: #{deep_mlp_forward.1} parent=0 // pred_check_branch
    %691 = sbr.rel (0) target = $region41
  $region40: #{deep_mlp_forward.1} parent=0 // pred_region
    _
  $region41: #{deep_mlp_forward.1} parent=0 // pred_fallthru
    _
  // Predicated region
  $region42: #{deep_mlp_forward.1} parent=0 // pred_check
    _
  $region43: #{deep_mlp_forward.1} parent=0 // pred_check_branch
    %693 = sbr.rel (0) target = $region45
  $region44: #{deep_mlp_forward.1} parent=0 // pred_region
    _
  $region45: #{deep_mlp_forward.1} parent=0 // pred_fallthru
    _

</llo_original>
